<compile_context>
chip_gen: v6e
topology: v6e:2x2x1
jax: 0.10.0
libtpu: 0.0.40
codegen_flags: <defaults>
</compile_context>

<pallas_src>
import functools

import jax
import jax.numpy as jnp
from jax.experimental import pallas as pl
from jax.experimental.pallas import tpu as pltpu

_LANE = 128


def _round_up(a, m):
    return ((a + m - 1) // m) * m


def _sublane_multiple(dtype):
    # Sub-32-bit dtypes pack along sublanes: 8 rows for 32-bit, 16 for 16-bit, 32 for 8-bit.
    bits = jnp.dtype(dtype).itemsize * 8
    return max(8, 256 // bits)


def _choose_tiling(batch, channels, hw, itemsize, *, max_lanes=8192, min_lanes=1024,
                   block_budget_bytes=2 * 1024 * 1024):
    """Pick (k, t): k frames packed per block along batch, t lanes per block along H*W."""
    hw128 = _round_up(hw, _LANE)
    # f32 upcast temps dominate VMEM for narrow input dtypes -> budget with >= 4 B/elem.
    bytes_per_lane = channels * max(itemsize, 4)
    t_cap = max(_LANE, (block_budget_bytes // bytes_per_lane) // _LANE * _LANE)
    t = min(max_lanes, t_cap, hw128)
    # Prefer an exact divisor of the 128-aligned H*W (all steps equal-sized), but never drop
    # below min_lanes just to avoid one ragged edge tile.
    n = hw128 // _LANE
    for m in range(t // _LANE, 0, -1):
        if n % m == 0:
            cand = m * _LANE
            if cand >= min(min_lanes, t):
                t = cand
            break
    # Multi-batch packing for small frames: largest divisor of `batch` under the block budget.
    per_frame = channels * t * max(itemsize, 4)
    max_k = max(1, block_budget_bytes // per_frame)
    k = 1
    for cand in range(min(batch, max_k), 0, -1):
        if batch % cand == 0:
            k = cand
            break
    return k, t


def _ln_kernel_biasfree(x_ref, w_ref, o_ref, *, eps):
    # x_ref: (k, C, t) -- k frames, channels on sublanes, lane-dense H*W tile.
    x = x_ref[...].astype(jnp.float32)
    inv_c = jnp.float32(1.0 / x.shape[1])
    mean = jnp.sum(x, axis=1, keepdims=True) * inv_c          # (k, 1, t)
    d = x - mean                                              # mean-shifted: no cancellation
    var = jnp.sum(d * d, axis=1, keepdims=True) * inv_c       # biased variance, f32
    inv = jax.lax.rsqrt(var + jnp.float32(eps))               # EUP rsqrt
    w = w_ref[...].astype(jnp.float32)[None, :, :]            # (1, C, 1), resident
    # NOTE: numerator intentionally NOT mean-centered (BiasFree_LayerNorm semantics).
    o_ref[...] = (x * inv * w).astype(o_ref.dtype)


def _ln_kernel_withbias(x_ref, w_ref, b_ref, o_ref, *, eps):
    x = x_ref[...].astype(jnp.float32)
    inv_c = jnp.float32(1.0 / x.shape[1])
    mean = jnp.sum(x, axis=1, keepdims=True) * inv_c
    d = x - mean
    var = jnp.sum(d * d, axis=1, keepdims=True) * inv_c
    inv = jax.lax.rsqrt(var + jnp.float32(eps))
    w = w_ref[...].astype(jnp.float32)[None, :, :]
    b = b_ref[...].astype(jnp.float32)[None, :, :]
    o_ref[...] = (d * inv * w + b).astype(o_ref.dtype)


def layernorm_nchw(x, weight, bias=None, *, eps=1e-5, max_lanes=8192,
                   block_budget_bytes=2 * 1024 * 1024, input_buffers=None):
    """Channel LayerNorm of an NCHW tensor (== to_4d(LN(to_3d(x)), H, W) from the PyTorch arch).

    bias=None     -> BiasFree_LayerNorm semantics
    bias=(C,) arr -> WithBias_LayerNorm semantics (used by CasMEMVSR's CasBiGDFN blocks)
    """
    B, C, H, W = x.shape
    assert weight.shape == (C,)
    sub = _sublane_multiple(x.dtype)
    assert C % sub == 0, f"C={C} must be a multiple of {sub} for {x.dtype} sublane packing"

    HW = H * W
    k, t = _choose_tiling(B, C, HW, jnp.dtype(x.dtype).itemsize,
                          max_lanes=max_lanes, block_budget_bytes=block_budget_bytes)

    x3 = x.reshape(B, C, HW)      # free metadata reshape of the contiguous NCHW tensor
    w2 = weight.reshape(C, 1)

    x_spec_kwargs = {}
    if input_buffers is not None:
        # Optional deeper pipelining for the strided input DMA (sweepable; off by default).
        x_spec_kwargs = dict(pipeline_mode=pl.Buffered(input_buffers))

    in_specs = [
        pl.BlockSpec((k, C, t), lambda b, j: (b, 0, j), **x_spec_kwargs),
        pl.BlockSpec((C, 1), lambda b, j: (0, 0)),            # resident across the whole grid
    ]
    args = [x3, w2]
    if bias is None:
        kernel = functools.partial(_ln_kernel_biasfree, eps=eps)
    else:
        assert bias.shape == (C,)
        kernel = functools.partial(_ln_kernel_withbias, eps=eps)
        in_specs.append(pl.BlockSpec((C, 1), lambda b, j: (0, 0)))
        args.append(bias.reshape(C, 1))

    out = pl.pallas_call(
        kernel,
        out_shape=jax.ShapeDtypeStruct((B, C, HW), x.dtype),
        grid_spec=pltpu.PrefetchScalarGridSpec(
            num_scalar_prefetch=0,
            grid=(B // k, pl.cdiv(HW, t)),
            in_specs=in_specs,
            out_specs=pl.BlockSpec((k, C, t), lambda b, j: (b, 0, j)),
        ),
        compiler_params=pltpu.CompilerParams(
            dimension_semantics=("parallel", "parallel"),
        ),
    )(*args)

    return out.reshape(B, C, H, W)


def _reference_nchw(x, weight, bias=None):
    """Pure-JAX reference matching the PyTorch LayerNorm applied via to_3d/to_4d."""
    x32 = x.astype(jnp.float32)
    mu = jnp.mean(x32, axis=1, keepdims=True)
    var = jnp.mean((x32 - mu) ** 2, axis=1, keepdims=True)    # unbiased=False
    w = weight.astype(jnp.float32)[None, :, None, None]
    if bias is None:
        y = x32 / jnp.sqrt(var + 1e-5) * w
    else:
        b = bias.astype(jnp.float32)[None, :, None, None]
        y = (x32 - mu) / jnp.sqrt(var + 1e-5) * w + b
    return y.astype(x.dtype)


# TODO(synk): only the LayerNorm components of CasMEMVSR are implemented as Pallas kernels here;
# the convolutions / GDFN / CBAM / pixel-shuffle / recurrent propagation remain JAX/XLA ops.

if __name__ == "__main__":
    key = jax.random.PRNGKey(0)
    ks = jax.random.split(key, 6)

    # Case 1: BiasFree LN, CasMEMVSR mid_channels=64, small 16x16 frames.
    # Nonzero channel mean exercises the mean-shifted variance; batch packing (k=2) kicks in.
    B, C, H, W = 2, 64, 16, 16
    x = jax.random.normal(ks[0], (B, C, H, W), dtype=jnp.float32) + 3.0
    w = 1.0 + 0.1 * jax.random.normal(ks[1], (C,), dtype=jnp.float32)
    out = jax.block_until_ready(layernorm_nchw(x, w))
    ref = _reference_nchw(x, w)
    assert out.shape == x.shape and out.dtype == x.dtype
    assert jnp.allclose(out, ref, atol=1e-4, rtol=1e-4), "BiasFree case mismatch vs reference"

    # Case 2: WithBias LN (CasMEMVSR's actual LayerNorm_type), H*W=120 not a multiple of 128:
    # exercises the masked ragged edge tile with NO pad/slice HBM passes.
    B2, C2, H2, W2 = 2, 64, 10, 12
    x2 = jax.random.normal(ks[2], (B2, C2, H2, W2), dtype=jnp.float32) - 1.5
    w2 = 1.0 + 0.1 * jax.random.normal(ks[3], (C2,), dtype=jnp.float32)
    b2 = 0.1 * jax.random.normal(ks[4], (C2,), dtype=jnp.float32)
    out2 = jax.block_until_ready(layernorm_nchw(x2, w2, b2))
    ref2 = _reference_nchw(x2, w2, b2)
    assert out2.shape == x2.shape and out2.dtype == x2.dtype
    assert jnp.allclose(out2, ref2, atol=1e-4, rtol=1e-4), "WithBias case mismatch vs reference"

    # Case 3: bf16 input (C=64 is a multiple of 16), larger frame -> 8192-lane tiles,
    # multi-step lane grid with the weight block resident across steps.
    B3, C3, H3, W3 = 1, 64, 128, 128
    x3 = (0.5 * jax.random.normal(ks[5], (B3, C3, H3, W3), dtype=jnp.float32) + 2.0
          ).astype(jnp.bfloat16)
    w3 = jnp.ones((C3,), dtype=jnp.bfloat16)
    out3 = jax.block_until_ready(layernorm_nchw(x3, w3))
    ref3 = _reference_nchw(x3, w3)
    assert out3.shape == x3.shape and out3.dtype == jnp.bfloat16
    assert jnp.allclose(out3.astype(jnp.float32), ref3.astype(jnp.float32),
                        atol=3e-2, rtol=3e-2), "bf16 case mismatch vs reference"

    print("KERNEL_OK")
</pallas_src>

<mosaic_0001>
module attributes {stable_mosaic.version = 11 : i64} {
  func.func @_ln_kernel_biasfree(%arg0: i32, %arg1: i32, %arg2: memref<2x64x256xf32, #tpu.memory_space<vmem>>, %arg3: memref<64x1xf32, #tpu.memory_space<vmem>>, %arg4: memref<2x64x256xf32, #tpu.memory_space<vmem>>) attributes {dimension_semantics = [#tpu.dimension_semantics<parallel>, #tpu.dimension_semantics<parallel>], iteration_bounds = array<i64: 1, 1>, scalar_prefetch = 0 : i64, scratch_operands = 0 : i64, tpu.core_type = #tpu.core_type<tc>, window_params = [{transform_indices = @transform_0, window_bounds = array<i64: 2, 64, 256>}, {pipeline_mode = #tpu.pipeline_mode<synchronous>, transform_indices = @transform_1, window_bounds = array<i64: 64, 1>}, {transform_indices = @transform_2, window_bounds = array<i64: 2, 64, 256>}]} {
    %c0 = arith.constant 0 : index
    %c0_0 = arith.constant 0 : index
    %c0_1 = arith.constant 0 : index
    %0 = vector.load %arg2[%c0, %c0_0, %c0_1] : memref<2x64x256xf32, #tpu.memory_space<vmem>>, vector<2x64x256xf32>
    %cst = arith.constant dense<0.000000e+00> : vector<2x256xf32>
    %1 = vector.multi_reduction <add>, %0, %cst [1] : vector<2x64x256xf32> to vector<2x256xf32>
    %2 = vector.shape_cast %1 : vector<2x256xf32> to vector<2x1x256xf32>
    %cst_2 = arith.constant 1.562500e-02 : f32
    %3 = vector.broadcast %cst_2 : f32 to vector<2x1x256xf32>
    %4 = arith.mulf %2, %3 : vector<2x1x256xf32>
    %5 = vector.broadcast %4 : vector<2x1x256xf32> to vector<2x64x256xf32>
    %6 = arith.subf %0, %5 : vector<2x64x256xf32>
    %7 = arith.mulf %6, %6 : vector<2x64x256xf32>
    %cst_3 = arith.constant dense<0.000000e+00> : vector<2x256xf32>
    %8 = vector.multi_reduction <add>, %7, %cst_3 [1] : vector<2x64x256xf32> to vector<2x256xf32>
    %9 = vector.shape_cast %8 : vector<2x256xf32> to vector<2x1x256xf32>
    %cst_4 = arith.constant 1.562500e-02 : f32
    %10 = vector.broadcast %cst_4 : f32 to vector<2x1x256xf32>
    %11 = arith.mulf %9, %10 : vector<2x1x256xf32>
    %cst_5 = arith.constant 9.99999974E-6 : f32
    %12 = vector.broadcast %cst_5 : f32 to vector<2x1x256xf32>
    %13 = arith.addf %11, %12 : vector<2x1x256xf32>
    %14 = math.rsqrt %13 : vector<2x1x256xf32>
    %c0_6 = arith.constant 0 : index
    %c0_7 = arith.constant 0 : index
    %15 = vector.load %arg3[%c0_6, %c0_7] : memref<64x1xf32, #tpu.memory_space<vmem>>, vector<64x1xf32>
    %16 = vector.shape_cast %15 : vector<64x1xf32> to vector<1x64x1xf32>
    %17 = vector.broadcast %14 : vector<2x1x256xf32> to vector<2x64x256xf32>
    %18 = arith.mulf %0, %17 : vector<2x64x256xf32>
    %19 = vector.broadcast %16 : vector<1x64x1xf32> to vector<2x64x256xf32>
    %20 = arith.mulf %18, %19 : vector<2x64x256xf32>
    %c0_8 = arith.constant 0 : index
    %c0_9 = arith.constant 0 : index
    %c0_10 = arith.constant 0 : index
    %21 = vector.load %arg4[%c0_8, %c0_9, %c0_10] : memref<2x64x256xf32, #tpu.memory_space<vmem>>, vector<2x64x256xf32>
    tpu.vector_store %arg4[%c0_8, %c0_9, %c0_10], %20 {strides = array<i32>} : memref<2x64x256xf32, #tpu.memory_space<vmem>>, vector<2x64x256xf32>,
    return
  }
  func.func @transform_0(%arg0: i32, %arg1: i32) -> (i32, i32, i32) {
    %c0_i32 = arith.constant 0 : i32
    %c0_i32_0 = arith.constant 0 : i32
    return %arg0, %c0_i32, %arg1 : i32, i32, i32
  }
  func.func @transform_1(%arg0: i32, %arg1: i32) -> (i32, i32) {
    %c0_i32 = arith.constant 0 : i32
    %c0_i32_0 = arith.constant 0 : i32
    %c0_i32_1 = arith.constant 0 : i32
    return %c0_i32, %c0_i32_0 : i32, i32
  }
  func.func @transform_2(%arg0: i32, %arg1: i32) -> (i32, i32, i32) {
    %c0_i32 = arith.constant 0 : i32
    %c0_i32_0 = arith.constant 0 : i32
    return %arg0, %c0_i32, %arg1 : i32, i32, i32
  }
}

</mosaic_0001>

<llo_original>
// kernel: tpu_custom_call.1
$region0: #{tpu_custom_call.1}
  #allocation0 [shape = 'u32[]', space=smem, size = 0x4, offset = 0x4, fixed_abs, tag = 'smem constant byte address 0x4 - core index']
  #allocation1 [shape = 'u32[144,128]{1,0:T(1,128)}', space=vmem, size = 0x12000, scoped, tag = 'internal scratch']
  %s0 = inlined_call_operand.hbm [shape: f32[2,64,256], index: 0, kind: input, shape index: {}]
  %s1 = inlined_call_operand.vmem [shape: f32[64,1], index: 1, kind: input, shape index: {}]
  %s2 = inlined_call_operand.hbm [shape: f32[2,64,256], index: 2, kind: output, shape index: {}]
  %s3 = sld [smem:[#allocation0]]
  $region22: #{tpu_custom_call.1} parent=0
    _
  %s5 = ssub.s32 1, %s3
  %s6 = scalar_select 0, %s5, %s3
  $region1: #{tpu_custom_call.1} parent=0
    #allocation2 [shape = 'u8[131072]{0}', space=vmem, size = 0x20000, scoped, tag = 'input window, operand 0, single buffered']
    #allocation3 [shape = 's32[1]{0}', space=sflag, size = 0x4, scoped, tag = 'scoped memory for tpu_custom_call.1']
    #allocation4 [shape = 's32[1]{0}', space=sflag, size = 0x4, scoped, tag = 'scoped memory for tpu_custom_call.1']
    #allocation5 [shape = 'u8[131072]{0}', space=vmem, size = 0x20000, scoped, tag = 'output window, operand 0, single buffered']
    %7 = vsyncpa [#allocation3], 0
    %8 = vsyncpa [#allocation4], 0
    // Predicated region
    $region2: #{tpu_custom_call.1} parent=1 // pred_check
      _
    $region3: #{tpu_custom_call.1} parent=1 // pred_check_branch
      %10 = sbr.rel (0) target = $region5
    $region4: #{tpu_custom_call.1} parent=1 // pred_region
      %s12 = ssub.s32 4096, 4096
      %13 = vsyncadd [#allocation3], %s12
      %s14 = sshll.u32 [#allocation2], 4
      %s15 = int_to_ptr.vmem [resolvable:$true] %s14
      %20 = dma.hbm_to_vmem [thread:$0]  %s0, 4096, %s15, [#allocation3], 256, 256, 16
    $region5: #{tpu_custom_call.1} parent=1 // pred_fallthru
      _
    // Predicated region
    $region6: #{tpu_custom_call.1} parent=1 // pred_check
      _
    $region7: #{tpu_custom_call.1} parent=1 // pred_check_branch
      %22 = sbr.rel (0) target = $region9
    $region8: #{tpu_custom_call.1} parent=1 // pred_region
      _
    $region9: #{tpu_custom_call.1} parent=1 // pred_fallthru
      _
    // Predicated region
    $region10: #{tpu_custom_call.1} parent=1 // pred_check
      _
    $region11: #{tpu_custom_call.1} parent=1 // pred_check_branch
      %24 = sbr.rel (0) target = $region13
    $region12: #{tpu_custom_call.1} parent=1 // pred_region
      %25 = dma.done [#allocation3], 4096
    $region13: #{tpu_custom_call.1} parent=1 // pred_fallthru
      _
    %v26 = vld [vmem:[#allocation2] sm:$0xff]
    %v27 = vld [vmem:[#allocation2 + $0x8] sm:$0xff]
    %v28 = vld [vmem:[#allocation2 + $0x10] sm:$0xff]
    %v29 = vld [vmem:[#allocation2 + $0x18] sm:$0xff]
    %v30 = vld [vmem:[#allocation2 + $0x20] sm:$0xff]
    %v31 = vld [vmem:[#allocation2 + $0x28] sm:$0xff]
    %v32 = vld [vmem:[#allocation2 + $0x30] sm:$0xff]
    %v33 = vld [vmem:[#allocation2 + $0x38] sm:$0xff]
    %v34 = vld [vmem:[#allocation2 + $0x40] sm:$0xff]
    %v35 = vld [vmem:[#allocation2 + $0x48] sm:$0xff]
    %v36 = vld [vmem:[#allocation2 + $0x50] sm:$0xff]
    %v37 = vld [vmem:[#allocation2 + $0x58] sm:$0xff]
    %v38 = vld [vmem:[#allocation2 + $0x60] sm:$0xff]
    %v39 = vld [vmem:[#allocation2 + $0x68] sm:$0xff]
    %v40 = vld [vmem:[#allocation2 + $0x70] sm:$0xff]
    %v41 = vld [vmem:[#allocation2 + $0x78] sm:$0xff]
    %v42 = vld [vmem:[#allocation2 + $0x80] sm:$0xff]
    %v43 = vld [vmem:[#allocation2 + $0x88] sm:$0xff]
    %v44 = vld [vmem:[#allocation2 + $0x90] sm:$0xff]
    %v45 = vld [vmem:[#allocation2 + $0x98] sm:$0xff]
    %v46 = vld [vmem:[#allocation2 + $0xa0] sm:$0xff]
    %v47 = vld [vmem:[#allocation2 + $0xa8] sm:$0xff]
    %v48 = vld [vmem:[#allocation2 + $0xb0] sm:$0xff]
    %v49 = vld [vmem:[#allocation2 + $0xb8] sm:$0xff]
    %v50 = vld [vmem:[#allocation2 + $0xc0] sm:$0xff]
    %v51 = vld [vmem:[#allocation2 + $0xc8] sm:$0xff]
    %v52 = vld [vmem:[#allocation2 + $0xd0] sm:$0xff]
    %v53 = vld [vmem:[#allocation2 + $0xd8] sm:$0xff]
    %v54 = vld [vmem:[#allocation2 + $0xe0] sm:$0xff]
    %v55 = vld [vmem:[#allocation2 + $0xe8] sm:$0xff]
    %v56 = vld [vmem:[#allocation2 + $0xf0] sm:$0xff]
    %v57 = vld [vmem:[#allocation2 + $0xf8] sm:$0xff]
    %v58 = vadd.f32 %v26, %v28
    %v59 = vadd.f32 %v58, %v30
    %v60 = vadd.f32 %v59, %v32
    %v61 = vadd.f32 %v60, %v34
    %v62 = vadd.f32 %v61, %v36
    %v63 = vadd.f32 %v62, %v38
    %v64 = vadd.f32 %v63, %v40
    %v65 = vrot.slane %v64, 4
    %v66 = vadd.f32 %v64, %v65
    %v67 = vrot.slane %v66, 2
    %v68 = vadd.f32 %v66, %v67
    %v69 = vrot.slane %v68, 1
    %v70 = vadd.f32 %v68, %v69
    %v71 = vadd.f32 %v27, %v29
    %v72 = vadd.f32 %v71, %v31
    %v73 = vadd.f32 %v72, %v33
    %v74 = vadd.f32 %v73, %v35
    %v75 = vadd.f32 %v74, %v37
    %v76 = vadd.f32 %v75, %v39
    %v77 = vadd.f32 %v76, %v41
    %v78 = vrot.slane %v77, 4
    %v79 = vadd.f32 %v77, %v78
    %v80 = vrot.slane %v79, 2
    %v81 = vadd.f32 %v79, %v80
    %v82 = vrot.slane %v81, 1
    %v83 = vadd.f32 %v81, %v82
    %v84 = vadd.f32 %v42, %v44
    %v85 = vadd.f32 %v84, %v46
    %v86 = vadd.f32 %v85, %v48
    %v87 = vadd.f32 %v86, %v50
    %v88 = vadd.f32 %v87, %v52
    %v89 = vadd.f32 %v88, %v54
    %v90 = vadd.f32 %v89, %v56
    %v91 = vrot.slane %v90, 4
    %v92 = vadd.f32 %v90, %v91
    %v93 = vrot.slane %v92, 2
    %v94 = vadd.f32 %v92, %v93
    %v95 = vrot.slane %v94, 1
    %v96 = vadd.f32 %v94, %v95
    %v97 = vadd.f32 %v43, %v45
    %v98 = vadd.f32 %v97, %v47
    %v99 = vadd.f32 %v98, %v49
    %v100 = vadd.f32 %v99, %v51
    %v101 = vadd.f32 %v100, %v53
    %v102 = vadd.f32 %v101, %v55
    %v103 = vadd.f32 %v102, %v57
    %v104 = vrot.slane %v103, 4
    %v105 = vadd.f32 %v103, %v104
    %v106 = vrot.slane %v105, 2
    %v107 = vadd.f32 %v105, %v106
    %v108 = vrot.slane %v107, 1
    %v109 = vadd.f32 %v107, %v108
    %v110 = vmul.f32 %v70, 0.015625
    %v111 = vmul.f32 %v83, 0.015625
    %v112 = vmul.f32 %v96, 0.015625
    %v113 = vmul.f32 %v109, 0.015625
    %v114 = vsub.f32 %v26, %v110
    %v115 = vsub.f32 %v27, %v111
    %v116 = vsub.f32 %v28, %v110
    %v117 = vsub.f32 %v29, %v111
    %v118 = vsub.f32 %v30, %v110
    %v119 = vsub.f32 %v31, %v111
    %v120 = vsub.f32 %v32, %v110
    %v121 = vsub.f32 %v33, %v111
    %v122 = vsub.f32 %v34, %v110
    %v123 = vsub.f32 %v35, %v111
    %v124 = vsub.f32 %v36, %v110
    %v125 = vsub.f32 %v37, %v111
    %v126 = vsub.f32 %v38, %v110
    %v127 = vsub.f32 %v39, %v111
    %v128 = vsub.f32 %v40, %v110
    %v129 = vsub.f32 %v41, %v111
    %v130 = vsub.f32 %v42, %v112
    %v131 = vsub.f32 %v43, %v113
    %v132 = vsub.f32 %v44, %v112
    %v133 = vsub.f32 %v45, %v113
    %v134 = vsub.f32 %v46, %v112
    %v135 = vsub.f32 %v47, %v113
    %v136 = vsub.f32 %v48, %v112
    %v137 = vsub.f32 %v49, %v113
    %v138 = vsub.f32 %v50, %v112
    %v139 = vsub.f32 %v51, %v113
    %v140 = vsub.f32 %v52, %v112
    %v141 = vsub.f32 %v53, %v113
    %v142 = vsub.f32 %v54, %v112
    %v143 = vsub.f32 %v55, %v113
    %v144 = vsub.f32 %v56, %v112
    %v145 = vsub.f32 %v57, %v113
    %v146 = vmul.f32 %v114, %v114
    %v147 = vmul.f32 %v115, %v115
    %v148 = vmul.f32 %v116, %v116
    %v149 = vmul.f32 %v117, %v117
    %v150 = vmul.f32 %v118, %v118
    %v151 = vmul.f32 %v119, %v119
    %v152 = vmul.f32 %v120, %v120
    %v153 = vmul.f32 %v121, %v121
    %v154 = vmul.f32 %v122, %v122
    %v155 = vmul.f32 %v123, %v123
    %v156 = vmul.f32 %v124, %v124
    %v157 = vmul.f32 %v125, %v125
    %v158 = vmul.f32 %v126, %v126
    %v159 = vmul.f32 %v127, %v127
    %v160 = vmul.f32 %v128, %v128
    %v161 = vmul.f32 %v129, %v129
    %v162 = vmul.f32 %v130, %v130
    %v163 = vmul.f32 %v131, %v131
    %v164 = vmul.f32 %v132, %v132
    %v165 = vmul.f32 %v133, %v133
    %v166 = vmul.f32 %v134, %v134
    %v167 = vmul.f32 %v135, %v135
    %v168 = vmul.f32 %v136, %v136
    %v169 = vmul.f32 %v137, %v137
    %v170 = vmul.f32 %v138, %v138
    %v171 = vmul.f32 %v139, %v139
    %v172 = vmul.f32 %v140, %v140
    %v173 = vmul.f32 %v141, %v141
    %v174 = vmul.f32 %v142, %v142
    %v175 = vmul.f32 %v143, %v143
    %v176 = vmul.f32 %v144, %v144
    %v177 = vmul.f32 %v145, %v145
    %v178 = vadd.f32 %v146, %v148
    %v179 = vadd.f32 %v178, %v150
    %v180 = vadd.f32 %v179, %v152
    %v181 = vadd.f32 %v180, %v154
    %v182 = vadd.f32 %v181, %v156
    %v183 = vadd.f32 %v182, %v158
    %v184 = vadd.f32 %v183, %v160
    %v185 = vrot.slane %v184, 4
    %v186 = vadd.f32 %v184, %v185
    %v187 = vrot.slane %v186, 2
    %v188 = vadd.f32 %v186, %v187
    %v189 = vrot.slane %v188, 1
    %v190 = vadd.f32 %v188, %v189
    %v191 = vadd.f32 %v147, %v149
    %v192 = vadd.f32 %v191, %v151
    %v193 = vadd.f32 %v192, %v153
    %v194 = vadd.f32 %v193, %v155
    %v195 = vadd.f32 %v194, %v157
    %v196 = vadd.f32 %v195, %v159
    %v197 = vadd.f32 %v196, %v161
    %v198 = vrot.slane %v197, 4
    %v199 = vadd.f32 %v197, %v198
    %v200 = vrot.slane %v199, 2
    %v201 = vadd.f32 %v199, %v200
    %v202 = vrot.slane %v201, 1
    %v203 = vadd.f32 %v201, %v202
    %v204 = vadd.f32 %v162, %v164
    %v205 = vadd.f32 %v204, %v166
    %v206 = vadd.f32 %v205, %v168
    %v207 = vadd.f32 %v206, %v170
    %v208 = vadd.f32 %v207, %v172
    %v209 = vadd.f32 %v208, %v174
    %v210 = vadd.f32 %v209, %v176
    %v211 = vrot.slane %v210, 4
    %v212 = vadd.f32 %v210, %v211
    %v213 = vrot.slane %v212, 2
    %v214 = vadd.f32 %v212, %v213
    %v215 = vrot.slane %v214, 1
    %v216 = vadd.f32 %v214, %v215
    %v217 = vadd.f32 %v163, %v165
    %v218 = vadd.f32 %v217, %v167
    %v219 = vadd.f32 %v218, %v169
    %v220 = vadd.f32 %v219, %v171
    %v221 = vadd.f32 %v220, %v173
    %v222 = vadd.f32 %v221, %v175
    %v223 = vadd.f32 %v222, %v177
    %v224 = vrot.slane %v223, 4
    %v225 = vadd.f32 %v223, %v224
    %v226 = vrot.slane %v225, 2
    %v227 = vadd.f32 %v225, %v226
    %v228 = vrot.slane %v227, 1
    %v229 = vadd.f32 %v227, %v228
    %v230 = vmul.f32 %v190, 0.015625
    %v231 = vmul.f32 %v203, 0.015625
    %v232 = vmul.f32 %v216, 0.015625
    %v233 = vmul.f32 %v229, 0.015625
    %v234 = vadd.f32 %v230, 1e-05
    %v235 = vadd.f32 %v231, 1e-05
    %v236 = vadd.f32 %v232, 1e-05
    %v237 = vadd.f32 %v233, 1e-05
    %v238 = vrsqrt.pop %v234
    %v239 = vrsqrt.pop %v235
    %v240 = vrsqrt.pop %v236
    %v241 = vrsqrt.pop %v237
    %v242 = vld [vmem:[%s1] sm:$0xff]
    %v243 = vld [vmem:[%s1 + $0x8] sm:$0xff]
    %v244 = vld [vmem:[%s1 + $0x10] sm:$0xff]
    %v245 = vld [vmem:[%s1 + $0x18] sm:$0xff]
    %v246 = vld [vmem:[%s1 + $0x20] sm:$0xff]
    %v247 = vld [vmem:[%s1 + $0x28] sm:$0xff]
    %v248 = vld [vmem:[%s1 + $0x30] sm:$0xff]
    %v249 = vld [vmem:[%s1 + $0x38] sm:$0xff]
    %v250 = vmul.f32 %v26, %v238
    %v251 = vmul.f32 %v27, %v239
    %v252 = vmul.f32 %v28, %v238
    %v253 = vmul.f32 %v29, %v239
    %v254 = vmul.f32 %v30, %v238
    %v255 = vmul.f32 %v31, %v239
    %v256 = vmul.f32 %v32, %v238
    %v257 = vmul.f32 %v33, %v239
    %v258 = vmul.f32 %v34, %v238
    %v259 = vmul.f32 %v35, %v239
    %v260 = vmul.f32 %v36, %v238
    %v261 = vmul.f32 %v37, %v239
    %v262 = vmul.f32 %v38, %v238
    %v263 = vmul.f32 %v39, %v239
    %v264 = vmul.f32 %v40, %v238
    %v265 = vmul.f32 %v41, %v239
    %v266 = vmul.f32 %v42, %v240
    %v267 = vmul.f32 %v43, %v241
    %v268 = vmul.f32 %v44, %v240
    %v269 = vmul.f32 %v45, %v241
    %v270 = vmul.f32 %v46, %v240
    %v271 = vmul.f32 %v47, %v241
    %v272 = vmul.f32 %v48, %v240
    %v273 = vmul.f32 %v49, %v241
    %v274 = vmul.f32 %v50, %v240
    %v275 = vmul.f32 %v51, %v241
    %v276 = vmul.f32 %v52, %v240
    %v277 = vmul.f32 %v53, %v241
    %v278 = vmul.f32 %v54, %v240
    %v279 = vmul.f32 %v55, %v241
    %v280 = vmul.f32 %v56, %v240
    %v281 = vmul.f32 %v57, %v241
    %283 = vset.pattern.permute.xlu0 0
    %284 = vperm.xlu0 %283, %v242
    %v285 = vpop.permute.xlu0 %284
    %288 = vset.pattern.permute.xlu0 0
    %289 = vperm.xlu0 %288, %v243
    %v290 = vpop.permute.xlu0 %289
    %293 = vset.pattern.permute.xlu0 0
    %294 = vperm.xlu0 %293, %v244
    %v295 = vpop.permute.xlu0 %294
    %298 = vset.pattern.permute.xlu0 0
    %299 = vperm.xlu0 %298, %v245
    %v300 = vpop.permute.xlu0 %299
    %303 = vset.pattern.permute.xlu0 0
    %304 = vperm.xlu0 %303, %v246
    %v305 = vpop.permute.xlu0 %304
    %308 = vset.pattern.permute.xlu0 0
    %309 = vperm.xlu0 %308, %v247
    %v310 = vpop.permute.xlu0 %309
    %313 = vset.pattern.permute.xlu0 0
    %314 = vperm.xlu0 %313, %v248
    %v315 = vpop.permute.xlu0 %314
    %318 = vset.pattern.permute.xlu0 0
    %319 = vperm.xlu0 %318, %v249
    %v320 = vpop.permute.xlu0 %319
    %v322 = vmul.f32 %v250, %v285
    %v323 = vmul.f32 %v251, %v285
    %v324 = vmul.f32 %v252, %v290
    %v325 = vmul.f32 %v253, %v290
    %v326 = vmul.f32 %v254, %v295
    %v327 = vmul.f32 %v255, %v295
    %v328 = vmul.f32 %v256, %v300
    %v329 = vmul.f32 %v257, %v300
    %v330 = vmul.f32 %v258, %v305
    %v331 = vmul.f32 %v259, %v305
    %v332 = vmul.f32 %v260, %v310
    %v333 = vmul.f32 %v261, %v310
    %v334 = vmul.f32 %v262, %v315
    %v335 = vmul.f32 %v263, %v315
    %v336 = vmul.f32 %v264, %v320
    %v337 = vmul.f32 %v265, %v320
    %v338 = vmul.f32 %v266, %v285
    %v339 = vmul.f32 %v267, %v285
    %v340 = vmul.f32 %v268, %v290
    %v341 = vmul.f32 %v269, %v290
    %v342 = vmul.f32 %v270, %v295
    %v343 = vmul.f32 %v271, %v295
    %v344 = vmul.f32 %v272, %v300
    %v345 = vmul.f32 %v273, %v300
    %v346 = vmul.f32 %v274, %v305
    %v347 = vmul.f32 %v275, %v305
    %v348 = vmul.f32 %v276, %v310
    %v349 = vmul.f32 %v277, %v310
    %v350 = vmul.f32 %v278, %v315
    %v351 = vmul.f32 %v279, %v315
    %v352 = vmul.f32 %v280, %v320
    %v353 = vmul.f32 %v281, %v320
    %354 = vst [vmem:[#allocation5] sm:$0xff] %v322
    %355 = vst [vmem:[#allocation5 + $0x8] sm:$0xff] %v323
    %356 = vst [vmem:[#allocation5 + $0x10] sm:$0xff] %v324
    %357 = vst [vmem:[#allocation5 + $0x18] sm:$0xff] %v325
    %358 = vst [vmem:[#allocation5 + $0x20] sm:$0xff] %v326
    %359 = vst [vmem:[#allocation5 + $0x28] sm:$0xff] %v327
    %360 = vst [vmem:[#allocation5 + $0x30] sm:$0xff] %v328
    %361 = vst [vmem:[#allocation5 + $0x38] sm:$0xff] %v329
    %362 = vst [vmem:[#allocation5 + $0x40] sm:$0xff] %v330
    %363 = vst [vmem:[#allocation5 + $0x48] sm:$0xff] %v331
    %364 = vst [vmem:[#allocation5 + $0x50] sm:$0xff] %v332
    %365 = vst [vmem:[#allocation5 + $0x58] sm:$0xff] %v333
    %366 = vst [vmem:[#allocation5 + $0x60] sm:$0xff] %v334
    %367 = vst [vmem:[#allocation5 + $0x68] sm:$0xff] %v335
    %368 = vst [vmem:[#allocation5 + $0x70] sm:$0xff] %v336
    %369 = vst [vmem:[#allocation5 + $0x78] sm:$0xff] %v337
    %370 = vst [vmem:[#allocation5 + $0x80] sm:$0xff] %v338
    %371 = vst [vmem:[#allocation5 + $0x88] sm:$0xff] %v339
    %372 = vst [vmem:[#allocation5 + $0x90] sm:$0xff] %v340
    %373 = vst [vmem:[#allocation5 + $0x98] sm:$0xff] %v341
    %374 = vst [vmem:[#allocation5 + $0xa0] sm:$0xff] %v342
    %375 = vst [vmem:[#allocation5 + $0xa8] sm:$0xff] %v343
    %376 = vst [vmem:[#allocation5 + $0xb0] sm:$0xff] %v344
    %377 = vst [vmem:[#allocation5 + $0xb8] sm:$0xff] %v345
    %378 = vst [vmem:[#allocation5 + $0xc0] sm:$0xff] %v346
    %379 = vst [vmem:[#allocation5 + $0xc8] sm:$0xff] %v347
    %380 = vst [vmem:[#allocation5 + $0xd0] sm:$0xff] %v348
    %381 = vst [vmem:[#allocation5 + $0xd8] sm:$0xff] %v349
    %382 = vst [vmem:[#allocation5 + $0xe0] sm:$0xff] %v350
    %383 = vst [vmem:[#allocation5 + $0xe8] sm:$0xff] %v351
    %384 = vst [vmem:[#allocation5 + $0xf0] sm:$0xff] %v352
    %385 = vst [vmem:[#allocation5 + $0xf8] sm:$0xff] %v353
    // Predicated region
    $region14: #{tpu_custom_call.1} parent=1 // pred_check
      _
    $region15: #{tpu_custom_call.1} parent=1 // pred_check_branch
      %387 = sbr.rel (0) target = $region17
    $region16: #{tpu_custom_call.1} parent=1 // pred_region
      %s389 = ssub.s32 4096, 4096
      %390 = vsyncadd [#allocation4], %s389
      %s391 = sshll.u32 [#allocation5], 4
      %s392 = int_to_ptr.vmem [resolvable:$true] %s391
      %397 = dma.vmem_to_hbm [thread:$0]  %s392, 4096, %s2, [#allocation4], 256, 256, 16
    $region17: #{tpu_custom_call.1} parent=1 // pred_fallthru
      _
    // Predicated region
    $region18: #{tpu_custom_call.1} parent=1 // pred_check
      _
    $region19: #{tpu_custom_call.1} parent=1 // pred_check_branch
      %399 = sbr.rel (0) target = $region21
    $region20: #{tpu_custom_call.1} parent=1 // pred_region
      %400 = dma.done [#allocation4], 4096
    $region21: #{tpu_custom_call.1} parent=1 // pred_fallthru
      _
    %401 = vsyncpa [#allocation3], 1
    %402 = vsyncpa [#allocation4], 1

</llo_original>
